<compile_context>
chip_gen: v6e
topology: v6e:2x2x1
jax: 0.10.0
libtpu: 0.0.40
codegen_flags: <defaults>
</compile_context>

<pallas_src>
import functools
import math

import jax
import jax.numpy as jnp
from jax.experimental import pallas as pl
from jax.experimental.pallas import tpu as pltpu

DILATIONS = (1, 2, 3, 4)
KSIZE = 3
NUM_BRANCHES = len(DILATIONS) + 2  # 6


def _msc_tconv_kernel(x_ref, w1_ref, h1_ref, wbd_ref, ht_ref, smp_ref, hmp_ref,
                      o_ref, *, T, V, Cb, Nb):
    """One grid step: Nb samples, each a (C, T*V) slab (channels on sublanes,
    flattened time*vertex lane-dense on lanes)."""
    TV = T * V

    # Hoist parameter loads out of the per-sample loop.
    w1 = w1_ref[...]          # (6*Cb, Cin)    bf16, BN scale pre-folded
    h1 = h1_ref[...]          # (6*Cb, 1)      f32  (conv bias + BN shift)
    wbd = wbd_ref[...]        # (4*Cb, 12*Cb)  bf16, block-diagonal, BN scale folded
    ht = ht_ref[...]          # (4*Cb, 1)      f32
    smp = smp_ref[...]        # (Cb, 1)        f32
    hmp = hmp_ref[...]        # (Cb, 1)        f32

    def shift_t(z, s):
        """out[:, t*V+v] = z[:, (t+s)*V+v] for 0 <= t+s < T, else 0 (static lane shift)."""
        if s == 0:
            return z
        w = abs(s) * V
        zeros = jnp.zeros((z.shape[0], w), z.dtype)
        if s > 0:
            return jnp.concatenate([z[:, w:], zeros], axis=-1)
        return jnp.concatenate([zeros, z[:, :TV - w]], axis=-1)

    for n in range(Nb):
        x = x_ref[n]                                            # (Cin, TV) f32

        # Fused 1x1 conv of all 6 branches: one lane-dense bf16 MXU matmul.
        y = jnp.dot(w1, x.astype(jnp.bfloat16),
                    preferred_element_type=jnp.float32)         # (6*Cb, TV)
        y = y + h1

        # One wide ReLU for branches 0..4 (branch 5 has no ReLU).
        y_relu = jnp.maximum(y[:5 * Cb], 0.0)                   # (5*Cb, TV) f32

        # Branches 0..3: dilated (3,1) temporal convs.  Cast once to bf16, build
        # all 12 taps (4 branches x 3 taps x Cb rows) as static lane-shifted
        # views and hit the MXU once with a block-diagonal weight.
        yc = y_relu[:4 * Cb].astype(jnp.bfloat16)
        taps = []
        for b, d in enumerate(DILATIONS):
            zb = yc[b * Cb:(b + 1) * Cb]
            taps += [shift_t(zb, -d), zb, shift_t(zb, d)]       # k = 0, 1, 2
        stacked = jnp.concatenate(taps, axis=0)                 # (12*Cb, TV) bf16
        conv = jnp.dot(wbd, stacked,
                       preferred_element_type=jnp.float32)      # (4*Cb, TV) f32
        conv = conv + ht

        # Branch 4: (3,1) maxpool (stride 1, pad 1) + BN.  Zero padding is exact
        # because inputs are post-ReLU (>= 0) and the centre tap is real data.
        ymp = y_relu[4 * Cb:5 * Cb]                             # keep f32 (v5e VPU)
        mp = jnp.maximum(jnp.maximum(shift_t(ymp, -1), ymp), shift_t(ymp, 1))
        mp = mp * smp + hmp

        # Branch 5 is just y[5*Cb:].  Assemble all branches, add the identity
        # residual once, single aligned full-width store for this sample.
        out = jnp.concatenate([conv, mp, y[5 * Cb:]], axis=0) + x
        o_ref[n] = out


def _choose_block_batch(N, T, V, Cin, Cout, vmem_limit_bytes, min_grid_steps=2):
    """Pick how many samples to fold into one grid step."""
    tv = T * V
    # f32 bytes per sample: 2x double-buffered in/out pipeline blocks plus a
    # generous allowance for in-kernel temporaries (y, y_relu, taps, out).
    per_sample = 4 * tv * (2 * (Cin + Cout) + 8 * Cout)
    budget = (vmem_limit_bytes * 7) // 8            # no double-discounted budget
    nb_cap = max(1, min(N, budget // per_sample))
    if N >= min_grid_steps:                         # keep >= min_grid_steps grid steps
        nb_cap = max(1, min(nb_cap, N // min_grid_steps))
    nb = 1
    for cand in range(1, nb_cap + 1):
        if N % cand == 0:
            nb = cand
    return nb


def multiscale_temporal_conv(x_nchw, params, *, block_batch=None,
                             vmem_limit_bytes=None, min_grid_steps=2):
    N, Cin, T, V = x_nchw.shape
    Cout = params['W1'].shape[0]
    assert Cout % NUM_BRANCHES == 0
    Cb = Cout // NUM_BRANCHES
    # TODO(synk): stride>1 / non-identity residual (TemporalConv residual) path
    # not implemented; demo config uses stride=1 and in_channels == out_channels.
    assert Cin == Cout, "identity residual path requires in_channels == out_channels"

    if vmem_limit_bytes is None:
        # Size against the actual chip: ~96 MiB on v5e/v6e (128 MiB VMEM),
        # ~48 MiB on v7x (64 MiB per TensorCore).  Fallback is v7x-safe.
        try:
            cap = int(getattr(pltpu.get_tpu_info(), 'vmem_capacity_bytes',
                              64 * 1024 * 1024))
        except Exception:
            cap = 64 * 1024 * 1024
        vmem_limit_bytes = (cap * 3) // 4

    Nb = block_batch if block_batch is not None else _choose_block_batch(
        N, T, V, Cin, Cout, vmem_limit_bytes, min_grid_steps)
    assert N % Nb == 0
    TV = T * V

    # Free reshapes only — no HBM transpose on either side of the kernel.
    x3 = x_nchw.reshape(N, Cin, TV)

    names = ('W1', 'H1', 'WBD', 'HT', 'SMP', 'HMP')

    def full_spec(arr):
        nd = arr.ndim
        return pl.BlockSpec(arr.shape, lambda i, _nd=nd: (0,) * _nd)

    in_specs = [pl.BlockSpec((Nb, Cin, TV), lambda i: (i, 0, 0))]
    in_specs += [full_spec(params[k]) for k in names]

    kernel = functools.partial(_msc_tconv_kernel, T=T, V=V, Cb=Cb, Nb=Nb)

    out3 = pl.pallas_call(
        kernel,
        out_shape=jax.ShapeDtypeStruct((N, Cout, TV), jnp.float32),
        grid=(N // Nb,),
        in_specs=in_specs,
        out_specs=pl.BlockSpec((Nb, Cout, TV), lambda i: (i, 0, 0)),
        compiler_params=pltpu.CompilerParams(
            dimension_semantics=("parallel",),
            vmem_limit_bytes=vmem_limit_bytes),
    )(x3, *[params[k] for k in names])

    return out3.reshape(N, Cout, T, V)


def reference_nchw(x, P):
    """Pure-JAX reference mirroring the PyTorch forward (NCHW), full f32 precision."""
    def conv(x, w, b, pad_t=0, dil_t=1):
        y = jax.lax.conv_general_dilated(
            x, w, window_strides=(1, 1),
            padding=((pad_t, pad_t), (0, 0)),
            rhs_dilation=(dil_t, 1),
            dimension_numbers=('NCHW', 'OIHW', 'NCHW'),
            precision=jax.lax.Precision.HIGHEST)
        return y + b[None, :, None, None]

    def bn(y, scale, shift):
        return y * scale[None, :, None, None] + shift[None, :, None, None]

    outs = []
    for b in range(NUM_BRANCHES):
        y = conv(x, P['w1_oihw'][b], P['b1'][b])
        y = bn(y, P['s1'][b], P['h1'][b])
        if b < NUM_BRANCHES - 1:
            y = jnp.maximum(y, 0.0)
        if b < 4:
            d = DILATIONS[b]
            y = conv(y, P['wt_oihw'][b], P['bt'][b], pad_t=d, dil_t=d)
            y = bn(y, P['st'][b], P['ht'][b])
        elif b == 4:
            y = jax.lax.reduce_window(y, -jnp.inf, jax.lax.max,
                                      (1, 1, 3, 1), (1, 1, 1, 1),
                                      ((0, 0), (0, 0), (1, 1), (0, 0)))
            y = bn(y, P['smp'], P['hmp'])
        outs.append(y)
    out = jnp.concatenate(outs, axis=1)
    return out + x


if __name__ == "__main__":
    N, Cin, T, V = 2, 12, 16, 16
    Cout = Cin                            # identity residual (in == out, stride == 1)
    Cb = Cout // NUM_BRANCHES
    eps = 1e-5

    key = jax.random.PRNGKey(0)
    k = jax.random.split(key, 6)

    # Conv weights: kaiming_normal_ (fan_out); conv biases: 0 (per weights_init).
    w1_gen = (jax.random.normal(k[0], (NUM_BRANCHES, Cb, Cin), jnp.float32)
              * math.sqrt(2.0 / (Cb * 1 * 1)))
    wt_gen = (jax.random.normal(k[1], (4, Cb, Cb, KSIZE), jnp.float32)
              * math.sqrt(2.0 / (Cb * KSIZE * 1)))
    b1 = jnp.zeros((NUM_BRANCHES, Cb), jnp.float32)
    bt = jnp.zeros((4, Cb), jnp.float32)

    # BatchNorm (eval mode, running mean=0 / var=1): gamma ~ N(1, 0.02), beta = 0.
    g1 = 1.0 + 0.02 * jax.random.normal(k[2], (NUM_BRANCHES, Cb), jnp.float32)
    gt = 1.0 + 0.02 * jax.random.normal(k[3], (4, Cb), jnp.float32)
    gmp = 1.0 + 0.02 * jax.random.normal(k[4], (Cb,), jnp.float32)
    s1 = g1 / jnp.sqrt(1.0 + eps); h1 = jnp.zeros_like(s1)
    st = gt / jnp.sqrt(1.0 + eps); ht = jnp.zeros_like(st)
    smp = gmp / jnp.sqrt(1.0 + eps); hmp = jnp.zeros_like(smp)

    x_nchw = jax.random.normal(k[5], (N, Cin, T, V), jnp.float32)

    # Kernel-layout params: BN scale folded into the matmul weights IN F32 first,
    # then cast to bf16; conv bias folded into the BN shift; shifts shaped
    # (rows, 1) to broadcast over the lane dimension.
    w1_fold = (w1_gen * s1[:, :, None]).reshape(NUM_BRANCHES * Cb, Cin)
    wt_fold = wt_gen * st[:, :, None, None]                        # (4, Cb, Cb, K)
    wt_km = jnp.transpose(wt_fold, (0, 1, 3, 2)).reshape(4, Cb, KSIZE * Cb)  # k-major
    wbd = jnp.zeros((4 * Cb, 4 * KSIZE * Cb), jnp.float32)          # block-diagonal
    for b in range(4):
        wbd = wbd.at[b * Cb:(b + 1) * Cb,
                     b * KSIZE * Cb:(b + 1) * KSIZE * Cb].set(wt_km[b])

    params = {
        'W1': w1_fold.astype(jnp.bfloat16),                         # (6*Cb, Cin)
        'H1': (h1 + b1 * s1).reshape(-1, 1),                        # (6*Cb, 1)
        'WBD': wbd.astype(jnp.bfloat16),                            # (4*Cb, 12*Cb)
        'HT': (ht + bt * st).reshape(-1, 1),                        # (4*Cb, 1)
        'SMP': smp[:, None],
        'HMP': hmp[:, None],
    }

    out_nchw = jax.block_until_ready(multiscale_temporal_conv(x_nchw, params))
    # Also exercise the batch-blocked (Nb > 1, grid = 1) path.
    out_blocked = jax.block_until_ready(
        multiscale_temporal_conv(x_nchw, params, block_batch=N))

    ref_params = {
        'w1_oihw': w1_gen[..., None, None],              # (6, Cb, Cin, 1, 1)
        'wt_oihw': wt_gen[..., None],                    # (4, Cb, Cb, K, 1)
        'b1': b1, 's1': s1, 'h1': h1,
        'bt': bt, 'st': st, 'ht': ht,
        'smp': smp, 'hmp': hmp,
    }
    ref = reference_nchw(x_nchw, ref_params)

    # Kernel matmuls run in bf16 (single MXU pass) vs. the f32-HIGHEST reference:
    # tolerance relaxed to bf16-level noise (still catches real bugs).
    scale = float(jnp.max(jnp.abs(ref)))
    tol = 5e-2 * max(1.0, scale)
    err = float(jnp.max(jnp.abs(out_nchw - ref)))
    err_b = float(jnp.max(jnp.abs(out_blocked - ref)))
    assert err <= tol, f"max abs err {err} (ref scale {scale})"
    assert err_b <= tol, f"blocked-path max abs err {err_b} (ref scale {scale})"
    print("KERNEL_OK")
</pallas_src>

<mosaic_0001>
module attributes {stable_mosaic.version = 11 : i64} {
  func.func @_msc_tconv_kernel(%arg0: i32, %arg1: memref<1x12x256xf32, #tpu.memory_space<vmem>>, %arg2: memref<12x12xbf16, #tpu.memory_space<vmem>>, %arg3: memref<12x1xf32, #tpu.memory_space<vmem>>, %arg4: memref<8x24xbf16, #tpu.memory_space<vmem>>, %arg5: memref<8x1xf32, #tpu.memory_space<vmem>>, %arg6: memref<2x1xf32, #tpu.memory_space<vmem>>, %arg7: memref<2x1xf32, #tpu.memory_space<vmem>>, %arg8: memref<1x12x256xf32, #tpu.memory_space<vmem>>) attributes {dimension_semantics = [#tpu.dimension_semantics<parallel>], iteration_bounds = array<i64: 2>, scalar_prefetch = 0 : i64, scratch_operands = 0 : i64, tpu.core_type = #tpu.core_type<tc>, window_params = [{transform_indices = @transform_0, window_bounds = array<i64: 1, 12, 256>}, {pipeline_mode = #tpu.pipeline_mode<synchronous>, transform_indices = @transform_1, window_bounds = array<i64: 12, 12>}, {pipeline_mode = #tpu.pipeline_mode<synchronous>, transform_indices = @transform_2, window_bounds = array<i64: 12, 1>}, {pipeline_mode = #tpu.pipeline_mode<synchronous>, transform_indices = @transform_3, window_bounds = array<i64: 8, 24>}, {pipeline_mode = #tpu.pipeline_mode<synchronous>, transform_indices = @transform_4, window_bounds = array<i64: 8, 1>}, {pipeline_mode = #tpu.pipeline_mode<synchronous>, transform_indices = @transform_5, window_bounds = array<i64: 2, 1>}, {pipeline_mode = #tpu.pipeline_mode<synchronous>, transform_indices = @transform_6, window_bounds = array<i64: 2, 1>}, {transform_indices = @transform_7, window_bounds = array<i64: 1, 12, 256>}]} {
    %c0 = arith.constant 0 : index
    %c0_0 = arith.constant 0 : index
    %0 = vector.load %arg2[%c0, %c0_0] : memref<12x12xbf16, #tpu.memory_space<vmem>>, vector<12x12xbf16>
    %c0_1 = arith.constant 0 : index
    %c0_2 = arith.constant 0 : index
    %1 = vector.load %arg3[%c0_1, %c0_2] : memref<12x1xf32, #tpu.memory_space<vmem>>, vector<12x1xf32>
    %c0_3 = arith.constant 0 : index
    %c0_4 = arith.constant 0 : index
    %2 = vector.load %arg4[%c0_3, %c0_4] : memref<8x24xbf16, #tpu.memory_space<vmem>>, vector<8x24xbf16>
    %c0_5 = arith.constant 0 : index
    %c0_6 = arith.constant 0 : index
    %3 = vector.load %arg5[%c0_5, %c0_6] : memref<8x1xf32, #tpu.memory_space<vmem>>, vector<8x1xf32>
    %c0_7 = arith.constant 0 : index
    %c0_8 = arith.constant 0 : index
    %4 = vector.load %arg6[%c0_7, %c0_8] : memref<2x1xf32, #tpu.memory_space<vmem>>, vector<2x1xf32>
    %c0_9 = arith.constant 0 : index
    %c0_10 = arith.constant 0 : index
    %5 = vector.load %arg7[%c0_9, %c0_10] : memref<2x1xf32, #tpu.memory_space<vmem>>, vector<2x1xf32>
    %c0_11 = arith.constant 0 : index
    %c0_12 = arith.constant 0 : index
    %c0_13 = arith.constant 0 : index
    %6 = vector.load %arg1[%c0_11, %c0_12, %c0_13] : memref<1x12x256xf32, #tpu.memory_space<vmem>>, vector<1x12x256xf32>
    %7 = vector.shape_cast %6 : vector<1x12x256xf32> to vector<12x256xf32>
    %8 = arith.truncf %7 : vector<12x256xf32> to vector<12x256xbf16>
    %cst = arith.constant dense<0.000000e+00> : vector<12x256xf32>
    %9 = tpu.matmul %0, %8, %cst {dimension_numbers = #tpu.dot_dimension_numbers<[1], [0], [0], [1], [0, 0, 1, 1], [], []>} : vector<12x12xbf16>, vector<12x256xbf16>, vector<12x256xf32> -> vector<12x256xf32>
    %10 = vector.broadcast %1 : vector<12x1xf32> to vector<12x256xf32>
    %11 = arith.addf %9, %10 : vector<12x256xf32>
    %12 = vector.extract_strided_slice %11 {offsets = [0, 0], sizes = [10, 256], strides = [1, 1]} : vector<12x256xf32> to vector<10x256xf32>
    %cst_14 = arith.constant 0.000000e+00 : f32
    %13 = vector.broadcast %cst_14 : f32 to vector<10x256xf32>
    %14 = arith.maximumf %12, %13 : vector<10x256xf32>
    %15 = vector.extract_strided_slice %14 {offsets = [0, 0], sizes = [8, 256], strides = [1, 1]} : vector<10x256xf32> to vector<8x256xf32>
    %16 = arith.truncf %15 : vector<8x256xf32> to vector<8x256xbf16>
    %17 = vector.extract_strided_slice %16 {offsets = [0, 0], sizes = [2, 256], strides = [1, 1]} : vector<8x256xbf16> to vector<2x256xbf16>
    %cst_15 = arith.constant 0.000000e+00 : bf16
    %18 = vector.broadcast %cst_15 : bf16 to vector<2x16xbf16>
    %19 = vector.extract_strided_slice %17 {offsets = [0, 0], sizes = [2, 240], strides = [1, 1]} : vector<2x256xbf16> to vector<2x240xbf16>
    %20 = tpu.concatenate %18, %19 in 1 : vector<2x16xbf16>, vector<2x240xbf16> -> vector<2x256xbf16>
    %cst_16 = arith.constant 0.000000e+00 : bf16
    %21 = vector.broadcast %cst_16 : bf16 to vector<2x16xbf16>
    %22 = vector.extract_strided_slice %17 {offsets = [0, 16], sizes = [2, 240], strides = [1, 1]} : vector<2x256xbf16> to vector<2x240xbf16>
    %23 = tpu.concatenate %22, %21 in 1 : vector<2x240xbf16>, vector<2x16xbf16> -> vector<2x256xbf16>
    %24 = vector.extract_strided_slice %16 {offsets = [2, 0], sizes = [2, 256], strides = [1, 1]} : vector<8x256xbf16> to vector<2x256xbf16>
    %cst_17 = arith.constant 0.000000e+00 : bf16
    %25 = vector.broadcast %cst_17 : bf16 to vector<2x32xbf16>
    %26 = vector.extract_strided_slice %24 {offsets = [0, 0], sizes = [2, 224], strides = [1, 1]} : vector<2x256xbf16> to vector<2x224xbf16>
    %27 = tpu.concatenate %25, %26 in 1 : vector<2x32xbf16>, vector<2x224xbf16> -> vector<2x256xbf16>
    %cst_18 = arith.constant 0.000000e+00 : bf16
    %28 = vector.broadcast %cst_18 : bf16 to vector<2x32xbf16>
    %29 = vector.extract_strided_slice %24 {offsets = [0, 32], sizes = [2, 224], strides = [1, 1]} : vector<2x256xbf16> to vector<2x224xbf16>
    %30 = tpu.concatenate %29, %28 in 1 : vector<2x224xbf16>, vector<2x32xbf16> -> vector<2x256xbf16>
    %31 = vector.extract_strided_slice %16 {offsets = [4, 0], sizes = [2, 256], strides = [1, 1]} : vector<8x256xbf16> to vector<2x256xbf16>
    %cst_19 = arith.constant 0.000000e+00 : bf16
    %32 = vector.broadcast %cst_19 : bf16 to vector<2x48xbf16>
    %33 = vector.extract_strided_slice %31 {offsets = [0, 0], sizes = [2, 208], strides = [1, 1]} : vector<2x256xbf16> to vector<2x208xbf16>
    %34 = tpu.concatenate %32, %33 in 1 : vector<2x48xbf16>, vector<2x208xbf16> -> vector<2x256xbf16>
    %cst_20 = arith.constant 0.000000e+00 : bf16
    %35 = vector.broadcast %cst_20 : bf16 to vector<2x48xbf16>
    %36 = vector.extract_strided_slice %31 {offsets = [0, 48], sizes = [2, 208], strides = [1, 1]} : vector<2x256xbf16> to vector<2x208xbf16>
    %37 = tpu.concatenate %36, %35 in 1 : vector<2x208xbf16>, vector<2x48xbf16> -> vector<2x256xbf16>
    %38 = vector.extract_strided_slice %16 {offsets = [6, 0], sizes = [2, 256], strides = [1, 1]} : vector<8x256xbf16> to vector<2x256xbf16>
    %cst_21 = arith.constant 0.000000e+00 : bf16
    %39 = vector.broadcast %cst_21 : bf16 to vector<2x64xbf16>
    %40 = vector.extract_strided_slice %38 {offsets = [0, 0], sizes = [2, 192], strides = [1, 1]} : vector<2x256xbf16> to vector<2x192xbf16>
    %41 = tpu.concatenate %39, %40 in 1 : vector<2x64xbf16>, vector<2x192xbf16> -> vector<2x256xbf16>
    %cst_22 = arith.constant 0.000000e+00 : bf16
    %42 = vector.broadcast %cst_22 : bf16 to vector<2x64xbf16>
    %43 = vector.extract_strided_slice %38 {offsets = [0, 64], sizes = [2, 192], strides = [1, 1]} : vector<2x256xbf16> to vector<2x192xbf16>
    %44 = tpu.concatenate %43, %42 in 1 : vector<2x192xbf16>, vector<2x64xbf16> -> vector<2x256xbf16>
    %45 = tpu.concatenate %20, %17, %23, %27, %24, %30, %34, %31, %37, %41, %38, %44 in 0 : vector<2x256xbf16>, vector<2x256xbf16>, vector<2x256xbf16>, vector<2x256xbf16>, vector<2x256xbf16>, vector<2x256xbf16>, vector<2x256xbf16>, vector<2x256xbf16>, vector<2x256xbf16>, vector<2x256xbf16>, vector<2x256xbf16>, vector<2x256xbf16> -> vector<24x256xbf16>
    %cst_23 = arith.constant dense<0.000000e+00> : vector<8x256xf32>
    %46 = tpu.matmul %2, %45, %cst_23 {dimension_numbers = #tpu.dot_dimension_numbers<[1], [0], [0], [1], [0, 0, 1, 1], [], []>} : vector<8x24xbf16>, vector<24x256xbf16>, vector<8x256xf32> -> vector<8x256xf32>
    %47 = vector.broadcast %3 : vector<8x1xf32> to vector<8x256xf32>
    %48 = arith.addf %46, %47 : vector<8x256xf32>
    %49 = vector.extract_strided_slice %14 {offsets = [8, 0], sizes = [2, 256], strides = [1, 1]} : vector<10x256xf32> to vector<2x256xf32>
    %cst_24 = arith.constant 0.000000e+00 : f32
    %50 = vector.broadcast %cst_24 : f32 to vector<2x16xf32>
    %51 = vector.extract_strided_slice %49 {offsets = [0, 0], sizes = [2, 240], strides = [1, 1]} : vector<2x256xf32> to vector<2x240xf32>
    %52 = tpu.concatenate %50, %51 in 1 : vector<2x16xf32>, vector<2x240xf32> -> vector<2x256xf32>
    %53 = arith.maximumf %52, %49 : vector<2x256xf32>
    %cst_25 = arith.constant 0.000000e+00 : f32
    %54 = vector.broadcast %cst_25 : f32 to vector<2x16xf32>
    %55 = vector.extract_strided_slice %49 {offsets = [0, 16], sizes = [2, 240], strides = [1, 1]} : vector<2x256xf32> to vector<2x240xf32>
    %56 = tpu.concatenate %55, %54 in 1 : vector<2x240xf32>, vector<2x16xf32> -> vector<2x256xf32>
    %57 = arith.maximumf %53, %56 : vector<2x256xf32>
    %58 = vector.broadcast %4 : vector<2x1xf32> to vector<2x256xf32>
    %59 = arith.mulf %57, %58 : vector<2x256xf32>
    %60 = vector.broadcast %5 : vector<2x1xf32> to vector<2x256xf32>
    %61 = arith.addf %59, %60 : vector<2x256xf32>
    %62 = vector.extract_strided_slice %11 {offsets = [10, 0], sizes = [2, 256], strides = [1, 1]} : vector<12x256xf32> to vector<2x256xf32>
    %63 = tpu.concatenate %48, %61, %62 in 0 : vector<8x256xf32>, vector<2x256xf32>, vector<2x256xf32> -> vector<12x256xf32>
    %64 = arith.addf %63, %7 : vector<12x256xf32>
    %c0_26 = arith.constant 0 : index
    %c0_27 = arith.constant 0 : index
    %c0_28 = arith.constant 0 : index
    %65 = vector.load %arg8[%c0_26, %c0_27, %c0_28] : memref<1x12x256xf32, #tpu.memory_space<vmem>>, vector<1x12x256xf32>
    %66 = vector.shape_cast %65 : vector<1x12x256xf32> to vector<12x256xf32>
    %67 = vector.shape_cast %64 : vector<12x256xf32> to vector<1x12x256xf32>
    tpu.vector_store %arg8[%c0_26, %c0_27, %c0_28], %67 {strides = array<i32>} : memref<1x12x256xf32, #tpu.memory_space<vmem>>, vector<1x12x256xf32>,
    return
  }
  func.func @transform_0(%arg0: i32) -> (i32, i32, i32) {
    %c0_i32 = arith.constant 0 : i32
    %c0_i32_0 = arith.constant 0 : i32
    %c0_i32_1 = arith.constant 0 : i32
    return %arg0, %c0_i32, %c0_i32_0 : i32, i32, i32
  }
  func.func @transform_1(%arg0: i32) -> (i32, i32) {
    %c0_i32 = arith.constant 0 : i32
    %c0_i32_0 = arith.constant 0 : i32
    %c0_i32_1 = arith.constant 0 : i32
    return %c0_i32, %c0_i32_0 : i32, i32
  }
  func.func @transform_2(%arg0: i32) -> (i32, i32) {
    %c0_i32 = arith.constant 0 : i32
    %c0_i32_0 = arith.constant 0 : i32
    %c0_i32_1 = arith.constant 0 : i32
    return %c0_i32, %c0_i32_0 : i32, i32
  }
  func.func @transform_3(%arg0: i32) -> (i32, i32) {
    %c0_i32 = arith.constant 0 : i32
    %c0_i32_0 = arith.constant 0 : i32
    %c0_i32_1 = arith.constant 0 : i32
    return %c0_i32, %c0_i32_0 : i32, i32
  }
  func.func @transform_4(%arg0: i32) -> (i32, i32) {
    %c0_i32 = arith.constant 0 : i32
    %c0_i32_0 = arith.constant 0 : i32
    %c0_i32_1 = arith.constant 0 : i32
    return %c0_i32, %c0_i32_0 : i32, i32
  }
  func.func @transform_5(%arg0: i32) -> (i32, i32) {
    %c0_i32 = arith.constant 0 : i32
    %c0_i32_0 = arith.constant 0 : i32
    %c0_i32_1 = arith.constant 0 : i32
    return %c0_i32, %c0_i32_0 : i32, i32
  }
  func.func @transform_6(%arg0: i32) -> (i32, i32) {
    %c0_i32 = arith.constant 0 : i32
    %c0_i32_0 = arith.constant 0 : i32
    %c0_i32_1 = arith.constant 0 : i32
    return %c0_i32, %c0_i32_0 : i32, i32
  }
  func.func @transform_7(%arg0: i32) -> (i32, i32, i32) {
    %c0_i32 = arith.constant 0 : i32
    %c0_i32_0 = arith.constant 0 : i32
    %c0_i32_1 = arith.constant 0 : i32
    return %arg0, %c0_i32, %c0_i32_0 : i32, i32, i32
  }
}

</mosaic_0001>

<llo_original>
// kernel: tpu_custom_call.1
$region0: #{tpu_custom_call.1}
  #allocation0 [shape = 'u32[]', space=smem, size = 0x4, offset = 0x4, fixed_abs, tag = 'smem constant byte address 0x4 - core index']
  #allocation1 [shape = 'u32[144,128]{1,0:T(1,128)}', space=vmem, size = 0x12000, scoped, tag = 'internal scratch']
  %s0 = inlined_call_operand.vmem [shape: f32[2,12,256], index: 0, kind: input, shape index: {}]
  %s1 = inlined_call_operand.vmem [shape: bf16[12,12], index: 1, kind: input, shape index: {}]
  %s2 = inlined_call_operand.vmem [shape: f32[12,1], index: 2, kind: input, shape index: {}]
  %s3 = inlined_call_operand.vmem [shape: bf16[8,24], index: 3, kind: input, shape index: {}]
  %s4 = inlined_call_operand.vmem [shape: f32[8,1], index: 4, kind: input, shape index: {}]
  %s5 = inlined_call_operand.vmem [shape: f32[2,1], index: 5, kind: input, shape index: {}]
  %s6 = inlined_call_operand.vmem [shape: f32[2,1], index: 6, kind: input, shape index: {}]
  %s7 = inlined_call_operand.vmem [shape: f32[2,12,256], index: 7, kind: output, shape index: {}]
  %s8 = sld [smem:[#allocation0]]
  $region61: #{tpu_custom_call.1} parent=0
    _
  %s10 = ssub.s32 1, %s8
  %s11 = scalar_select 0, %s10, %s8
  loop: start=0, step=1, limit=4
  $region2: #{tpu_custom_call.1} parent=0 // loop_pre_header
    _
  $region3: #{tpu_custom_call.1} parent=0 // loop_header
    %s13 = sphi 0, %s17
    %p14 = scmp.ge.s32.totalorder %s13, 4
    %s23 = sphi 0, %s25
    %s26 = sphi 0, %s23
    %s27 = sphi 0, %s26
    %s43 = sphi 0, %s27
    %s47 = sphi 0, %s47
    %s49 = sphi 0, %s47
    %s50 = sphi 0, %s49
    %s64 = sphi 0, %s50
    %s68 = sphi 0, %s68
    %s70 = sphi 0, %s68
    %s71 = sphi 0, %s70
    %s85 = sphi 0, %s71
    %s89 = sphi 0, %s89
    %s91 = sphi 0, %s89
    %s92 = sphi 0, %s91
    %s106 = sphi 0, %s92
    %s110 = sphi 0, %s110
    %s112 = sphi 0, %s110
    %s113 = sphi 0, %s112
    %s127 = sphi 0, %s113
    %s131 = sphi 0, %s131
    %s133 = sphi 0, %s131
    %s134 = sphi 0, %s133
    %s148 = sphi 0, %s134
    %s152 = sphi 0, %s152
    %s154 = sphi 0, %s152
    %s155 = sphi 0, %s154
    %s169 = sphi 0, %s155
    %s175 = sphi 0, %s177
    %s178 = sphi 0, %s175
    %s179 = sphi 0, %s178
    %s195 = sphi 0, %s179
  $region4: #{tpu_custom_call.1} parent=0 // loop_header_branch
    %16 = sbr.rel (%p14) target = $region8
  $region5: #{tpu_custom_call.1} parent=0 // loop_body
    %s18 = ssub.s32 %s13, 1
    %s19 = ssub.s32 %s13, 2
    %s20 = sadd.s32 %s13, 1
    %s21 = ssub.s32 %s13, %s20
    %p22 = scmp.eq.s32.totalorder %s21, 0
    %s24 = sadd.s32 %s23, 1
    %s25 = scalar_select %p22, %s23, %s24
    %p28 = pneg %p22
    %p29 = scmp.eq.s32.totalorder %s13, 1
    %p30 = por %p28, %p29
    %p31 = scmp.ne.s32.totalorder %s23, %s26
    %p32 = scmp.eq.s32.totalorder %s13, 0
    %p33 = por %p31, %p32
    %p34 = scmp.ne.s32.totalorder %s23, %s26
    %p35 = scmp.eq.s32.totalorder %s18, 1
    %p36 = por %p34, %p35
    %p37 = scmp.ne.s32.totalorder %s26, %s27
    %p38 = scmp.eq.s32.totalorder %s18, 0
    %p39 = por %p37, %p38
    %p40 = scmp.ne.s32.totalorder %s26, %s27
    %p41 = scmp.eq.s32.totalorder %s19, 1
    %p42 = por %p40, %p41
    %p44 = scmp.ne.s32.totalorder %s27, %s43
    %p45 = scmp.eq.s32.totalorder %s19, 0
    %p46 = por %p44, %p45
    %s48 = sadd.s32 %s47, 1
    %p51 = scmp.eq.s32.totalorder %s13, 1
    %p52 = scmp.ne.s32.totalorder %s47, %s49
    %p53 = scmp.eq.s32.totalorder %s13, 0
    %p54 = por %p52, %p53
    %p55 = scmp.ne.s32.totalorder %s47, %s49
    %p56 = scmp.eq.s32.totalorder %s18, 1
    %p57 = por %p55, %p56
    %p58 = scmp.ne.s32.totalorder %s49, %s50
    %p59 = scmp.eq.s32.totalorder %s18, 0
    %p60 = por %p58, %p59
    %p61 = scmp.ne.s32.totalorder %s49, %s50
    %p62 = scmp.eq.s32.totalorder %s19, 1
    %p63 = por %p61, %p62
    %p65 = scmp.ne.s32.totalorder %s50, %s64
    %p66 = scmp.eq.s32.totalorder %s19, 0
    %p67 = por %p65, %p66
    %s69 = sadd.s32 %s68, 1
    %p72 = scmp.eq.s32.totalorder %s13, 1
    %p73 = scmp.ne.s32.totalorder %s68, %s70
    %p74 = scmp.eq.s32.totalorder %s13, 0
    %p75 = por %p73, %p74
    %p76 = scmp.ne.s32.totalorder %s68, %s70
    %p77 = scmp.eq.s32.totalorder %s18, 1
    %p78 = por %p76, %p77
    %p79 = scmp.ne.s32.totalorder %s70, %s71
    %p80 = scmp.eq.s32.totalorder %s18, 0
    %p81 = por %p79, %p80
    %p82 = scmp.ne.s32.totalorder %s70, %s71
    %p83 = scmp.eq.s32.totalorder %s19, 1
    %p84 = por %p82, %p83
    %p86 = scmp.ne.s32.totalorder %s71, %s85
    %p87 = scmp.eq.s32.totalorder %s19, 0
    %p88 = por %p86, %p87
    %s90 = sadd.s32 %s89, 1
    %p93 = scmp.eq.s32.totalorder %s13, 1
    %p94 = scmp.ne.s32.totalorder %s89, %s91
    %p95 = scmp.eq.s32.totalorder %s13, 0
    %p96 = por %p94, %p95
    %p97 = scmp.ne.s32.totalorder %s89, %s91
    %p98 = scmp.eq.s32.totalorder %s18, 1
    %p99 = por %p97, %p98
    %p100 = scmp.ne.s32.totalorder %s91, %s92
    %p101 = scmp.eq.s32.totalorder %s18, 0
    %p102 = por %p100, %p101
    %p103 = scmp.ne.s32.totalorder %s91, %s92
    %p104 = scmp.eq.s32.totalorder %s19, 1
    %p105 = por %p103, %p104
    %p107 = scmp.ne.s32.totalorder %s92, %s106
    %p108 = scmp.eq.s32.totalorder %s19, 0
    %p109 = por %p107, %p108
    %s111 = sadd.s32 %s110, 1
    %p114 = scmp.eq.s32.totalorder %s13, 1
    %p115 = scmp.ne.s32.totalorder %s110, %s112
    %p116 = scmp.eq.s32.totalorder %s13, 0
    %p117 = por %p115, %p116
    %p118 = scmp.ne.s32.totalorder %s110, %s112
    %p119 = scmp.eq.s32.totalorder %s18, 1
    %p120 = por %p118, %p119
    %p121 = scmp.ne.s32.totalorder %s112, %s113
    %p122 = scmp.eq.s32.totalorder %s18, 0
    %p123 = por %p121, %p122
    %p124 = scmp.ne.s32.totalorder %s112, %s113
    %p125 = scmp.eq.s32.totalorder %s19, 1
    %p126 = por %p124, %p125
    %p128 = scmp.ne.s32.totalorder %s113, %s127
    %p129 = scmp.eq.s32.totalorder %s19, 0
    %p130 = por %p128, %p129
    %s132 = sadd.s32 %s131, 1
    %p135 = scmp.eq.s32.totalorder %s13, 1
    %p136 = scmp.ne.s32.totalorder %s131, %s133
    %p137 = scmp.eq.s32.totalorder %s13, 0
    %p138 = por %p136, %p137
    %p139 = scmp.ne.s32.totalorder %s131, %s133
    %p140 = scmp.eq.s32.totalorder %s18, 1
    %p141 = por %p139, %p140
    %p142 = scmp.ne.s32.totalorder %s133, %s134
    %p143 = scmp.eq.s32.totalorder %s18, 0
    %p144 = por %p142, %p143
    %p145 = scmp.ne.s32.totalorder %s133, %s134
    %p146 = scmp.eq.s32.totalorder %s19, 1
    %p147 = por %p145, %p146
    %p149 = scmp.ne.s32.totalorder %s134, %s148
    %p150 = scmp.eq.s32.totalorder %s19, 0
    %p151 = por %p149, %p150
    %s153 = sadd.s32 %s152, 1
    %p156 = scmp.eq.s32.totalorder %s13, 1
    %p157 = scmp.ne.s32.totalorder %s152, %s154
    %p158 = scmp.eq.s32.totalorder %s13, 0
    %p159 = por %p157, %p158
    %p160 = scmp.ne.s32.totalorder %s152, %s154
    %p161 = scmp.eq.s32.totalorder %s18, 1
    %p162 = por %p160, %p161
    %p163 = scmp.ne.s32.totalorder %s154, %s155
    %p164 = scmp.eq.s32.totalorder %s18, 0
    %p165 = por %p163, %p164
    %p166 = scmp.ne.s32.totalorder %s154, %s155
    %p167 = scmp.eq.s32.totalorder %s19, 1
    %p168 = por %p166, %p167
    %p170 = scmp.ne.s32.totalorder %s155, %s169
    %p171 = scmp.eq.s32.totalorder %s19, 0
    %p172 = por %p170, %p171
    %s173 = ssub.s32 %s13, %s20
    %p174 = scmp.eq.s32.totalorder %s173, 0
    %s176 = sadd.s32 %s175, 1
    %s177 = scalar_select %p174, %s175, %s176
    %p180 = pneg %p174
    %p181 = scmp.eq.s32.totalorder %s13, 1
    %p182 = por %p180, %p181
    %p183 = scmp.ne.s32.totalorder %s175, %s178
    %p184 = scmp.eq.s32.totalorder %s13, 0
    %p185 = por %p183, %p184
    %p186 = scmp.ne.s32.totalorder %s175, %s178
    %p187 = scmp.eq.s32.totalorder %s18, 1
    %p188 = por %p186, %p187
    %p189 = scmp.ne.s32.totalorder %s178, %s179
    %p190 = scmp.eq.s32.totalorder %s18, 0
    %p191 = por %p189, %p190
    %p192 = scmp.ne.s32.totalorder %s178, %s179
    %p193 = scmp.eq.s32.totalorder %s19, 1
    %p194 = por %p192, %p193
    %p196 = scmp.ne.s32.totalorder %s179, %s195
    %p197 = scmp.eq.s32.totalorder %s19, 0
    %p198 = por %p196, %p197
    %p199 = scmp.le.s32.totalorder 1, %s13
    %p200 = scmp.lt.s32.totalorder %s13, 3
    %p201 = pnand %p199, %p200
    %p202 = pneg %p201
    // Predicated region
    $region9: #{tpu_custom_call.1} parent=5 // pred_check
      _
    $region10: #{tpu_custom_call.1} parent=5 // pred_check_branch
      %204 = sbr.rel (%p201) target = $region12
    $region11: #{tpu_custom_call.1} parent=5 // pred_region
      %s205 = ssub.s32 %s13, 1
      // Predicated region
      $region13: #{tpu_custom_call.1} parent=11 // pred_check
        %p206 = pneg %p60
      $region14: #{tpu_custom_call.1} parent=11 // pred_check_branch
        %208 = sbr.rel (%p206) target = $region16
      $region15: #{tpu_custom_call.1} parent=11 // pred_region
        _
      $region16: #{tpu_custom_call.1} parent=11 // pred_fallthru
        _
      // Predicated region
      $region17: #{tpu_custom_call.1} parent=11 // pred_check
        %p209 = pneg %p81
      $region18: #{tpu_custom_call.1} parent=11 // pred_check_branch
        %211 = sbr.rel (%p209) target = $region20
      $region19: #{tpu_custom_call.1} parent=11 // pred_region
        _
      $region20: #{tpu_custom_call.1} parent=11 // pred_fallthru
        _
      // Predicated region
      $region21: #{tpu_custom_call.1} parent=11 // pred_check
        %p212 = pneg %p102
      $region22: #{tpu_custom_call.1} parent=11 // pred_check_branch
        %214 = sbr.rel (%p212) target = $region24
      $region23: #{tpu_custom_call.1} parent=11 // pred_region
        _
      $region24: #{tpu_custom_call.1} parent=11 // pred_fallthru
        _
      // Predicated region
      $region25: #{tpu_custom_call.1} parent=11 // pred_check
        %p215 = pneg %p123
      $region26: #{tpu_custom_call.1} parent=11 // pred_check_branch
        %217 = sbr.rel (%p215) target = $region28
      $region27: #{tpu_custom_call.1} parent=11 // pred_region
        _
      $region28: #{tpu_custom_call.1} parent=11 // pred_fallthru
        _
      // Predicated region
      $region29: #{tpu_custom_call.1} parent=11 // pred_check
        %p218 = pneg %p144
      $region30: #{tpu_custom_call.1} parent=11 // pred_check_branch
        %220 = sbr.rel (%p218) target = $region32
      $region31: #{tpu_custom_call.1} parent=11 // pred_region
        _
      $region32: #{tpu_custom_call.1} parent=11 // pred_fallthru
        _
      // Predicated region
      $region33: #{tpu_custom_call.1} parent=11 // pred_check
        %p221 = pneg %p165
      $region34: #{tpu_custom_call.1} parent=11 // pred_check_branch
        %223 = sbr.rel (%p221) target = $region36
      $region35: #{tpu_custom_call.1} parent=11 // pred_region
        _
      $region36: #{tpu_custom_call.1} parent=11 // pred_fallthru
        _
    $region12: #{tpu_custom_call.1} parent=5 // pred_fallthru
      _
    %p224 = scmp.lt.s32.totalorder %s13, 2
    // Predicated region
    $region37: #{tpu_custom_call.1} parent=5 // pred_check
      %p225 = pneg %p224
    $region38: #{tpu_custom_call.1} parent=5 // pred_check_branch
      %227 = sbr.rel (%p225) target = $region40
    $region39: #{tpu_custom_call.1} parent=5 // pred_region
      // Predicated region
      $region41: #{tpu_custom_call.1} parent=39 // pred_check
        %p228 = pneg %p33
      $region42: #{tpu_custom_call.1} parent=39 // pred_check_branch
        %230 = sbr.rel (%p228) target = $region44
      $region43: #{tpu_custom_call.1} parent=39 // pred_region
        %p231 = scmp.lt.s32.totalorder %s13, 1
        %s232 = scalar_select %p231, %s13, 1
        %s233 = smul.addr %s232, 4
        %s234 = smul.addr %s233, 8
        %s235 = scalar_lea.vmem %s0, %s234
      $region44: #{tpu_custom_call.1} parent=39 // pred_fallthru
        _
    $region40: #{tpu_custom_call.1} parent=5 // pred_fallthru
      _
    %p236 = scmp.le.s32.totalorder 1, %s13
    %p237 = scmp.lt.s32.totalorder %s13, 3
    %p238 = pnand %p236, %p237
    %p239 = pneg %p238
    // Predicated region
    $region45: #{tpu_custom_call.1} parent=5 // pred_check
      _
    $region46: #{tpu_custom_call.1} parent=5 // pred_check_branch
      %241 = sbr.rel (%p238) target = $region48
    $region47: #{tpu_custom_call.1} parent=5 // pred_region
      %s242 = ssub.s32 %s13, 1
      %p243 = scmp.lt.s32.totalorder %s18, 1
      %s244 = scalar_select %p243, %s18, 1
      %s245 = smul.addr %s244, 4
      %s246 = smul.addr %s245, 8
      %s247 = scalar_lea.vmem %s0, %s246
      %p248 = pneg %p39
      %p249 = pneg %p36
      %p250 = pneg %p60
      %p251 = pneg %p57
      %p252 = pneg %p81
      %p253 = pneg %p78
      %p254 = pneg %p102
      %p255 = pneg %p99
      %p256 = pneg %p123
      %p257 = pneg %p120
      %p258 = pneg %p144
      %p259 = pneg %p141
      %p260 = pneg %p165
      %p261 = pneg %p162
      %p262 = pneg %p191
      %p263 = pneg %p188
      %p264 = scmp.lt.s32.totalorder %s18, 1
      %s265 = scalar_select %p264, %s18, 1
      %s266 = smul.addr %s265, 4
      %s267 = smul.addr %s266, 8
      %s268 = scalar_lea.vmem %s7, %s267
      %p269 = scmp.lt.s32.totalorder %s18, 1
      %s270 = scalar_select %p269, %s18, 1
      %s271 = smul.addr %s270, 4
      %s272 = smul.addr %s271, 8
      %s273 = scalar_lea.vmem %s0, %s272
      %p274 = scmp.lt.s32.totalorder %s18, 1
      %s275 = scalar_select %p274, %s18, 1
      %s276 = smul.addr %s275, 4
      %s277 = smul.addr %s276, 8
      %s278 = scalar_lea.vmem %s7, %s277
      %v280 = vld [vmem:[%s1] sm:$0xf]
      %v281 = vld [vmem:[%s1 + $0x4] sm:$0x3]
      %v282 = vld [vmem:[%s2] sm:$0xff]
      %v283 = vld [vmem:[%s2 + $0x8] sm:$0xf]
      %v284 = vld [vmem:[%s3] sm:$0xf]
      %v285 = vld [vmem:[%s4] sm:$0xff]
      %v286 = vld [vmem:[%s5] sm:$0x3]
      %v287 = vld [vmem:[%s6] sm:$0x3]
      %v288 = vld [vmem:[%s273] sm:$0xff]
      %v289 = vld [vmem:[%s273 + $0x8] sm:$0xff]
      %v290 = vld [vmem:[%s273 + $0x10] sm:$0xf]
      %v291 = vld [vmem:[%s273 + $0x18] sm:$0xf]
      %v292 = vpack.c.bf16 %v290, %v288
      %v293 = vpack.c.bf16 %v291, %v289
      %295 = vset.pattern.permute.xlu0 0
      %296 = vperm.xlu0 %295, %v282
      %v297 = vpop.permute.xlu0 %296
      %300 = vset.pattern.permute.xlu0 0
      %301 = vperm.xlu0 %300, %v283
      %v302 = vpop.permute.xlu0 %301
      %v306 = vunpack.c.l.b16 %v280
      %v307 = vunpack.c.l.b16 %v281
      %v308 = vpack.c.b16 %v307, %v306
      %vm309 = vcmask 97280
      %v311 = vsel %vm309, %v308, 0
      %vm313 = vcmask 1045504
      %v315 = vsel %vm313, %v292, 0
      %v318 = vsel %vm313, %v293, 0
      %320 = vmatprep.subr.bf16.mxu0 0
      %321 = vmatpush1.bf16.msra.mxu0 0
      %322 = vmatprep.subr.bf16.mxu0 0
      %323 = vmatpush1.bf16.msra.mxu0 0
      %324 = vmatprep.subr.bf16.mxu0 0
      %325 = vmatpush1.bf16.msra.mxu0 0
      %326 = vmatprep.subr.bf16.mxu0 0
      %327 = vmatpush1.bf16.msra.mxu0 0
      %328 = vmatprep.subr.bf16.mxu0 0
      %329 = vmatpush1.bf16.msra.mxu0 0
      %330 = vmatprep.subr.bf16.mxu0 0
      %331 = vmatpush1.bf16.msra.mxu0 0
      %332 = vmatprep.subr.bf16.mxu0 0
      %333 = vmatpush1.bf16.msra.mxu0 0
      %334 = vmatprep.subr.bf16.mxu0 %v318
      %335 = vmatpush1.bf16.msra.mxu0 %v315
      %336 = vmatprep.subr.bf16.mxu0 0
      %337 = vmatpush2.bf16.msra.mxu0 0
      %338 = vmatprep.subr.bf16.mxu0 0
      %339 = vmatpush2.bf16.msra.mxu0 0
      %340 = vmatprep.subr.bf16.mxu0 0
      %341 = vmatpush2.bf16.msra.mxu0 0
      %342 = vmatprep.subr.bf16.mxu0 0
      %343 = vmatpush2.bf16.msra.mxu0 0
      %344 = vmatprep.subr.bf16.mxu0 0
      %345 = vmatpush2.bf16.msra.mxu0 0
      %346 = vmatprep.subr.bf16.mxu0 0
      %347 = vmatpush2.bf16.msra.mxu0 0
      %348 = vmatprep.subr.bf16.mxu0 0
      %349 = vmatpush2.bf16.msra.mxu0 0
      %350 = vmatprep.subr.bf16.mxu0 0
      %351 = vmatpush2.bf16.msra.mxu0 0
      %352 = vmatprep.mubr.bf16.mxu0 0
      %353 = vmatmul.mubr.bf16.gmra.mxu0 %v311
      %v354 = vpop.f32.mrf.mxu0
      %v355 = vadd.f32 %v297, %v354
      %v356 = vpop.f32.mrf.mxu0
      %v357 = vadd.f32 %v297, %v356
      %v358 = vpop.f32.mrf.mxu0
      %v359 = vadd.f32 %v302, %v358
      %v360 = vpop.f32.mrf.mxu0
      %v361 = vadd.f32 %v302, %v360
      %362 = vdwg.mxu0
      %v363 = vmax.f32 %v355, 0.0
      %v364 = vmax.f32 %v357, 0.0
      %v365 = vmax.f32 %v359, 0.0
      %v366 = vmax.f32 %v361, 0.0
      %v367 = vpack.c.bf16 %v363, %v363
      %v368 = vpack.c.bf16 %v364, %v364
      %371 = vrot.lane.b32.xlu0 %v367, 16
      %v372 = vpop.permute.xlu0 %371
      %373 = vrot.lane.b32.xlu0 %v368, 16
      %v374 = vpop.permute.xlu0 %373
      %vm375 = vcmask 130048
      %v376 = vsel %vm375, %v372, %v374
      %vm377 = vcmask 130048
      %v380 = vsel %vm377, 0, %v372
      %381 = vrot.lane.b32.xlu0 %v367, 112
      %v382 = vpop.permute.xlu0 %381
      %383 = vrot.lane.b32.xlu0 %v368, 112
      %v384 = vpop.permute.xlu0 %383
      %vm385 = vcmask 916480
      %v386 = vsel %vm385, %v382, %v384
      %vm387 = vcmask 916480
      %v389 = vsel %vm387, %v384, 0
      %v390 = vrot.slane %v367, 1
      %v391 = vrot.slane %v368, 1
      %392 = vrot.lane.b32.xlu0 %v390, 32
      %v393 = vpop.permute.xlu0 %392
      %394 = vrot.lane.b32.xlu0 %v391, 32
      %v395 = vpop.permute.xlu0 %394
      %vm396 = vcmask 261120
      %v397 = vsel %vm396, %v393, %v395
      %vm398 = vcmask 261120
      %v400 = vsel %vm398, 0, %v393
      %401 = vrot.lane.b32.xlu0 %v367, 96
      %v402 = vpop.permute.xlu0 %401
      %403 = vrot.lane.b32.xlu0 %v368, 96
      %v404 = vpop.permute.xlu0 %403
      %vm405 = vcmask 785408
      %v406 = vsel %vm405, %v402, %v404
      %vm407 = vcmask 785408
      %v409 = vsel %vm407, %v404, 0
      %v410 = vrot.slane %v367, 2
      %v411 = vrot.slane %v368, 2
      %412 = vrot.lane.b32.xlu0 %v410, 48
      %v413 = vpop.permute.xlu0 %412
      %414 = vrot.lane.b32.xlu0 %v411, 48
      %v415 = vpop.permute.xlu0 %414
      %vm416 = vcmask 392192
      %v417 = vsel %vm416, %v413, %v415
      %vm418 = vcmask 392192
      %v420 = vsel %vm418, 0, %v413
      %421 = vrot.lane.b32.xlu0 %v367, 80
      %v422 = vpop.permute.xlu0 %421
      %423 = vrot.lane.b32.xlu0 %v368, 80
      %v424 = vpop.permute.xlu0 %423
      %vm425 = vcmask 654336
      %v426 = vsel %vm425, %v422, %v424
      %vm427 = vcmask 654336
      %v429 = vsel %vm427, %v424, 0
      %v430 = vrot.slane %v367, 3
      %v431 = vrot.slane %v368, 3
      %432 = vrot.lane.b32.xlu0 %v430, 64
      %v433 = vpop.permute.xlu0 %432
      %434 = vrot.lane.b32.xlu0 %v431, 64
      %v435 = vpop.permute.xlu0 %434
      %vm436 = vcmask 523264
      %v437 = vsel %vm436, %v433, %v435
      %vm438 = vcmask 523264
      %v440 = vsel %vm438, 0, %v433
      %441 = vrot.lane.b32.xlu0 %v367, 64
      %v442 = vpop.permute.xlu0 %441
      %443 = vrot.lane.b32.xlu0 %v368, 64
      %v444 = vpop.permute.xlu0 %443
      %v445 = vsel %vm436, %v442, %v444
      %v447 = vsel %vm438, %v444, 0
      %v448 = vrot.slane %v367, 7
      %v449 = vrot.slane %v368, 7
      %v451 = vrot.slane %v386, 6
      %v452 = vrot.slane %v389, 6
      %v454 = vrot.slane %v400, 5
      %v455 = vrot.slane %v397, 5
      %v456 = vrot.slane %v367, 5
      %v457 = vrot.slane %v368, 5
      %v459 = vrot.slane %v406, 4
      %v460 = vrot.slane %v409, 4
      %v462 = vrot.slane %v420, 2
      %v463 = vrot.slane %v417, 2
      %v465 = vrot.slane %v426, 2
      %v466 = vrot.slane %v429, 2
      %v468 = vrot.slane %v440, 7
      %v469 = vrot.slane %v437, 7
      %vm470 = vcmask 1040384
      %v472 = vsel %vm470, %v380, %v448
      %v475 = vsel %vm470, %v376, %v449
      %vm476 = vcmask 1041408
      %v478 = vsel %vm476, %v472, %v451
      %v480 = vsel %vm476, %v475, %v452
      %vm481 = vcmask 1042432
      %v483 = vsel %vm481, %v478, %v454
      %v485 = vsel %vm481, %v480, %v455
      %vm486 = vcmask 1043456
      %v488 = vsel %vm486, %v483, %v456
      %v490 = vsel %vm486, %v485, %v457
      %vm491 = vcmask 1044480
      %v493 = vsel %vm491, %v488, %v459
      %v495 = vsel %vm491, %v490, %v460
      %v497 = vsel %vm313, %v493, %v462
      %v499 = vsel %vm313, %v495, %v463
      %vm500 = vcmask 1046528
      %v502 = vsel %vm500, %v497, %v430
      %v505 = vsel %vm500, %v499, %v431
      %v509 = vsel %vm470, %v465, %v468
      %v512 = vsel %vm470, %v466, %v469
      %v514 = vsel %vm476, %v509, %v390
      %v516 = vsel %vm476, %v512, %v391
      %v518 = vsel %vm481, %v514, %v445
      %v519 = vsel %vm481, %v516, %v447
      %521 = vset.pattern.permute.xlu0 0
      %522 = vperm.xlu0 %521, %v285
      %v523 = vpop.permute.xlu0 %522
      %vm525 = vcmask 195584
      %v527 = vsel %vm525, %v284, 0
      %v529 = vsel %vm486, %v518, 0
      %v531 = vsel %vm486, %v519, 0
      %533 = vmatprep.subr.bf16.mxu0 0
      %534 = vmatpush1.bf16.msra.mxu0 0
      %535 = vmatprep.subr.bf16.mxu0 0
      %536 = vmatpush1.bf16.msra.mxu0 0
      %537 = vmatprep.subr.bf16.mxu0 0
      %538 = vmatpush1.bf16.msra.mxu0 0
      %539 = vmatprep.subr.bf16.mxu0 0
      %540 = vmatpush1.bf16.msra.mxu0 0
      %541 = vmatprep.subr.bf16.mxu0 0
      %542 = vmatpush1.bf16.msra.mxu0 0
      %543 = vmatprep.subr.bf16.mxu0 0
      %544 = vmatpush1.bf16.msra.mxu0 0
      %545 = vmatprep.subr.bf16.mxu0 %v531
      %546 = vmatpush1.bf16.msra.mxu0 %v529
      %547 = vmatprep.subr.bf16.mxu0 %v505
      %548 = vmatpush1.bf16.msra.mxu0 %v502
      %549 = vmatprep.subr.bf16.mxu0 0
      %550 = vmatpush2.bf16.msra.mxu0 0
      %551 = vmatprep.subr.bf16.mxu0 0
      %552 = vmatpush2.bf16.msra.mxu0 0
      %553 = vmatprep.subr.bf16.mxu0 0
      %554 = vmatpush2.bf16.msra.mxu0 0
      %555 = vmatprep.subr.bf16.mxu0 0
      %556 = vmatpush2.bf16.msra.mxu0 0
      %557 = vmatprep.subr.bf16.mxu0 0
      %558 = vmatpush2.bf16.msra.mxu0 0
      %559 = vmatprep.subr.bf16.mxu0 0
      %560 = vmatpush2.bf16.msra.mxu0 0
      %561 = vmatprep.subr.bf16.mxu0 0
      %562 = vmatpush2.bf16.msra.mxu0 0
      %563 = vmatprep.subr.bf16.mxu0 0
      %564 = vmatpush2.bf16.msra.mxu0 0
      %565 = vmatprep.mubr.bf16.mxu0 0
      %566 = vmatmul.mubr.bf16.gmra.mxu0 %v527
      %v567 = vpop.f32.mrf.mxu0
      %v568 = vadd.f32 %v523, %v567
      %v569 = vpop.f32.mrf.mxu0
      %v570 = vadd.f32 %v523, %v569
      %v571 = vpop.f32.mrf.mxu0
      %v572 = vpop.f32.mrf.mxu0
      %573 = vdwg.mxu0
      %576 = vrot.lane.b32.xlu0 %v365, 16
      %v577 = vpop.permute.xlu0 %576
      %578 = vrot.lane.b32.xlu0 %v366, 16
      %v579 = vpop.permute.xlu0 %578
      %v580 = vsel %vm377, %v577, %v579
      %v583 = vsel %vm377, 0.0, %v577
      %v584 = vmax.f32 %v583, %v365
      %v585 = vmax.f32 %v580, %v366
      %586 = vrot.lane.b32.xlu0 %v365, 112
      %v587 = vpop.permute.xlu0 %586
      %588 = vrot.lane.b32.xlu0 %v366, 112
      %v589 = vpop.permute.xlu0 %588
      %v590 = vsel %vm387, %v587, %v589
      %v593 = vsel %vm387, %v589, 0.0
      %v594 = vmax.f32 %v584, %v590
      %v595 = vmax.f32 %v585, %v593
      %597 = vset.pattern.permute.xlu0 0
      %598 = vperm.xlu0 %597, %v286
      %v599 = vpop.permute.xlu0 %598
      %v601 = vmul.f32 %v594, %v599
      %v602 = vmul.f32 %v595, %v599
      %604 = vset.pattern.permute.xlu0 0
      %605 = vperm.xlu0 %604, %v287
      %v606 = vpop.permute.xlu0 %605
      %v608 = vadd.f32 %v601, %v606
      %v609 = vadd.f32 %v602, %v606
      %v610 = vsel %vm476, %v608, %v359
      %v611 = vsel %vm476, %v609, %v361
      %v612 = vadd.f32 %v568, %v288
      %v613 = vadd.f32 %v570, %v289
      %v614 = vadd.f32 %v610, %v290
      %v615 = vadd.f32 %v611, %v291
      %616 = vst [vmem:[%s278] sm:$0xff] %v612
      %617 = vst [vmem:[%s278 + $0x8] sm:$0xff] %v613
      %618 = vst [vmem:[%s278 + $0x10] sm:$0xf] %v614
      %619 = vst [vmem:[%s278 + $0x18] sm:$0xf] %v615
      %p620 = scmp.lt.s32.totalorder %s18, 1
      %s621 = scalar_select %p620, %s18, 1
      %s622 = smul.addr %s621, 4
      %s623 = smul.addr %s622, 8
      %s624 = scalar_lea.vmem %s7, %s623
      // Predicated region
      $region49: #{tpu_custom_call.1} parent=47 // pred_check
        %p625 = pneg %p188
      $region50: #{tpu_custom_call.1} parent=47 // pred_check_branch
        %627 = sbr.rel (%p625) target = $region52
      $region51: #{tpu_custom_call.1} parent=47 // pred_region
        _
      $region52: #{tpu_custom_call.1} parent=47 // pred_fallthru
        _
    $region48: #{tpu_custom_call.1} parent=5 // pred_fallthru
      _
    %p628 = scmp.le.s32.totalorder 2, %s13
    // Predicated region
    $region53: #{tpu_custom_call.1} parent=5 // pred_check
      %p629 = pneg %p628
    $region54: #{tpu_custom_call.1} parent=5 // pred_check_branch
      %631 = sbr.rel (%p629) target = $region56
    $region55: #{tpu_custom_call.1} parent=5 // pred_region
      %s632 = ssub.s32 %s13, 2
      // Predicated region
      $region57: #{tpu_custom_call.1} parent=55 // pred_check
        %p633 = pneg %p194
      $region58: #{tpu_custom_call.1} parent=55 // pred_check_branch
        %635 = sbr.rel (%p633) target = $region60
      $region59: #{tpu_custom_call.1} parent=55 // pred_region
        %p636 = scmp.lt.s32.totalorder %s19, 1
        %s637 = scalar_select %p636, %s19, 1
        %s638 = smul.addr %s637, 4
        %s639 = smul.addr %s638, 8
        %s640 = scalar_lea.vmem %s7, %s639
      $region60: #{tpu_custom_call.1} parent=55 // pred_fallthru
        _
    $region56: #{tpu_custom_call.1} parent=5 // pred_fallthru
      _
  $region6: #{tpu_custom_call.1} parent=0 // loop_footer
    %s17 = sadd.s32 1, %s13
  $region7: #{tpu_custom_call.1} parent=0 // loop_footer_branch
    %12 = sbr.rel target = $region3
  $region8: #{tpu_custom_call.1} parent=0 // loop_exit
    _

</llo_original>
